<compile_context>
chip_gen: v5e
topology: v5e:2x2
jax: 0.10.0
libtpu: 0.0.40
codegen_flags: <defaults>
</compile_context>

<pallas_src>
import jax
import jax.numpy as jnp
from jax import lax
from jax.experimental import pallas as pl
from jax.experimental.pallas import tpu as pltpu

NEAR_INF = 1e20
_HIGHEST = lax.Precision.HIGHEST

# Conservative across v5e/v6e (128 MiB VMEM) and v7x (64 MiB VMEM).
_VMEM_BUDGET_BYTES = 24 * 1024 * 1024


def general_attention_kernel(xes_ref, last_h_ref, enc_ref, mask_ref,
                             w_attn_t_ref, w_cx_t_ref, w_ca_t_ref,
                             out_ref, attnw_ref):
    """One batch block of Luong 'general' attention, fully in VMEM.

    Shapes (f32):
      xes_ref:      (Bb, E)       decoder input state
      last_h_ref:   (Bb, H)       last-layer RNN hidden state
      enc_ref:      (Bb, Sp, D)   encoder outputs, seq padded to Sp (128-mult)
      mask_ref:     (Bb, Sp)      1.0 valid / 0.0 pad (incl. Sp padding)
      w_attn_t_ref: (H, D)        attn.weight.T             (pre-transposed)
      w_cx_t_ref:   (E, E)        attn_combine.weight[:, :E].T
      w_ca_t_ref:   (D, E)        attn_combine.weight[:, E:].T
      out_ref:      (Bb, E)
      attnw_ref:    (Bb, Sp)
    """
    xes = xes_ref[...]
    last_h = last_h_ref[...]
    enc = enc_ref[...]
    mask = mask_ref[...]

    # hid = self.attn(last_hidden): (Bb, H) @ (H, D) on the MXU, no transpose.
    hid = jnp.dot(last_h, w_attn_t_ref[...],
                  precision=_HIGHEST, preferred_element_type=jnp.float32)

    # scores[b,s] = sum_d hid[b,d] * enc[b,s,d].  M=1 batched matvecs are the
    # worst MXU shape, so compute on the VPU: broadcast-mul + lane reduce.
    scores = jnp.sum(hid[:, None, :] * enc, axis=-1)            # (Bb, Sp)

    # masked_fill_(1 - attn_mask, -NEAR_INF)
    scores = jnp.where(mask > 0.0, scores, -NEAR_INF)

    # softmax over the (padded) seq dim; masked/padded positions underflow to
    # exactly 0 weight.  approx=False keeps 1e-5 agreement with the reference.
    m = jnp.max(scores, axis=-1, keepdims=True)
    e = jnp.exp(scores - m)
    denom = jnp.sum(e, axis=-1, keepdims=True)
    weights = e * pl.reciprocal(denom, approx=False)
    attnw_ref[...] = weights.astype(attnw_ref.dtype)

    # attn_applied[b,d] = sum_s weights[b,s] * enc[b,s,d]  (VPU path, see above)
    applied = jnp.sum(weights[:, :, None] * enc, axis=1)        # (Bb, D)

    # output = tanh(attn_combine(cat(xes, attn_applied))): concat folded into
    # two matmuls against the split / pre-transposed combine weight.
    out = jnp.tanh(
        jnp.dot(xes, w_cx_t_ref[...],
                precision=_HIGHEST, preferred_element_type=jnp.float32)
        + jnp.dot(applied, w_ca_t_ref[...],
                  precision=_HIGHEST, preferred_element_type=jnp.float32))
    out_ref[...] = out.astype(out_ref.dtype)


def _pick_batch_block(B, S_pad, D, E, H):
    """Largest batch block (multiple of 8 dividing B, or B itself) whose
    double-buffered working set fits the conservative VMEM budget."""
    if B <= 8 or B % 8 != 0:
        return B
    bytes_per_row = 4 * (S_pad * D + 2 * S_pad + 2 * E + H + D)   # f32
    weight_bytes = 4 * (H * D + E * E + D * E)

    def fits(bb):
        return 2 * bb * bytes_per_row + 2 * weight_bytes <= _VMEM_BUDGET_BYTES

    bb = 8
    while bb * 2 <= B and B % (bb * 2) == 0 and fits(bb * 2):
        bb *= 2
    return bb


def attention_layer_general(xes, hidden, enc_out, attn_mask, w_attn, w_combine):
    """Mirror of AttentionLayer.forward for attn_type='general', attn_time='pre'.

    xes:       (B, 1, E)
    hidden:    (L, B, H)  (or (h, c) tuple for LSTM)
    enc_out:   (B, S, D)  with D = hsz * num_dirs
    attn_mask: (B, S)     1 valid / 0 pad
    w_attn:    (D, H)     torch nn.Linear(hsz, hszXdirs, bias=False).weight
    w_combine: (E, D+E)   torch nn.Linear(hszXdirs + E, E, bias=False).weight
    returns (output (B,1,E), attn_weights (B,S))
    """
    if isinstance(hidden, tuple):          # LSTM: (h, c) -> h
        hidden = hidden[0]

    B, S, D = enc_out.shape
    E = xes.shape[-1]
    H = hidden.shape[-1]
    last_hidden = hidden[-1]               # (B, H)
    xes2 = xes.reshape(B, E)

    # Pad the seq dim to a lane multiple so attn weights / scores are
    # lane-dense; padded positions get mask=0 -> exactly-zero weight.
    # NOTE: rows whose mask is entirely zero still produce a (degenerate)
    # uniform softmax, same as the torch module.
    S_pad = ((S + 127) // 128) * 128
    mask_f = attn_mask.astype(jnp.float32)
    if S_pad != S:
        enc_p = jnp.pad(enc_out, ((0, 0), (0, S_pad - S), (0, 0)))
        mask_p = jnp.pad(mask_f, ((0, 0), (0, S_pad - S)))
    else:
        enc_p, mask_p = enc_out, mask_f

    # Pre-transpose / split weights once so the kernel never transposes or
    # concatenates.
    w_attn_t = w_attn.T                    # (H, D)
    w_cx_t = w_combine[:, :E].T            # (E, E)  acts on xes
    w_ca_t = w_combine[:, E:].T            # (D, E)  acts on attn_applied

    Bb = _pick_batch_block(B, S_pad, D, E, H)
    grid = (B // Bb,)

    out2d, attnw_p = pl.pallas_call(
        general_attention_kernel,
        out_shape=(
            jax.ShapeDtypeStruct((B, E), xes.dtype),
            jax.ShapeDtypeStruct((B, S_pad), jnp.float32),
        ),
        grid_spec=pltpu.PrefetchScalarGridSpec(
            num_scalar_prefetch=0,
            grid=grid,
            in_specs=[
                pl.BlockSpec((Bb, E), lambda b: (b, 0)),          # xes
                pl.BlockSpec((Bb, H), lambda b: (b, 0)),          # last hidden
                pl.BlockSpec((Bb, S_pad, D), lambda b: (b, 0, 0)),  # enc_out
                pl.BlockSpec((Bb, S_pad), lambda b: (b, 0)),      # mask
                pl.BlockSpec((H, D), lambda b: (0, 0)),           # resident W
                pl.BlockSpec((E, E), lambda b: (0, 0)),
                pl.BlockSpec((D, E), lambda b: (0, 0)),
            ],
            out_specs=(
                pl.BlockSpec((Bb, E), lambda b: (b, 0)),
                pl.BlockSpec((Bb, S_pad), lambda b: (b, 0)),
            ),
        ),
        compiler_params=pltpu.CompilerParams(
            dimension_semantics=("parallel",),
            vmem_limit_bytes=_VMEM_BUDGET_BYTES + (8 << 20),
        ),
    )(xes2, last_hidden, enc_p, mask_p, w_attn_t, w_cx_t, w_ca_t)

    return out2d[:, None, :], attnw_p[:, :S]


def _reference(xes, hidden, enc_out, attn_mask, w_attn, w_combine):
    """Pure-JAX reference of the torch forward (attn_type='general')."""
    last_hidden = hidden[-1]
    hid = jnp.dot(last_hidden, w_attn.T, precision=_HIGHEST)
    scores = jnp.einsum('bd,bsd->bs', hid, enc_out, precision=_HIGHEST)
    scores = jnp.where(attn_mask > 0, scores, -NEAR_INF)
    weights = jax.nn.softmax(scores, axis=1)
    applied = jnp.einsum('bs,bsd->bd', weights, enc_out, precision=_HIGHEST)
    merged = jnp.concatenate([xes[:, 0, :], applied], axis=1)
    out = jnp.tanh(jnp.dot(merged, w_combine.T, precision=_HIGHEST))
    return out[:, None, :], weights


if __name__ == "__main__":
    # Small shapes consistent with the module.
    B, S = 2, 8          # batch, encoder seq length
    H = 32               # hiddensize
    E = 32               # embeddingsize (attn_time='pre' -> input_dim = E)
    L = 2                # num rnn layers
    D = H                # hszXdirs (bidirectional=False)

    key = jax.random.PRNGKey(0)
    k1, k2, k3, k4, k5 = jax.random.split(key, 5)

    xes = jax.random.normal(k1, (B, 1, E), jnp.float32)
    hidden = jax.random.normal(k2, (L, B, H), jnp.float32)
    enc_out = jax.random.normal(k3, (B, S, D), jnp.float32)

    # mask: first example fully valid, second has 5 valid tokens
    lengths = jnp.array([S, 5])
    attn_mask = (jnp.arange(S)[None, :] < lengths[:, None]).astype(jnp.float32)

    # PyTorch-Linear-style init: U(-1/sqrt(fan_in), 1/sqrt(fan_in)), bias=False.
    bound_attn = 1.0 / (H ** 0.5)
    bound_comb = 1.0 / ((D + E) ** 0.5)
    w_attn = jax.random.uniform(k4, (D, H), jnp.float32,
                                minval=-bound_attn, maxval=bound_attn)
    w_combine = jax.random.uniform(k5, (E, D + E), jnp.float32,
                                   minval=-bound_comb, maxval=bound_comb)

    out, attn_w = attention_layer_general(xes, hidden, enc_out, attn_mask,
                                          w_attn, w_combine)
    out = jax.block_until_ready(out)
    attn_w = jax.block_until_ready(attn_w)

    ref_out, ref_w = _reference(xes, hidden, enc_out, attn_mask,
                                w_attn, w_combine)
    assert out.shape == (B, 1, E) and attn_w.shape == (B, S)
    assert jnp.allclose(out, ref_out, atol=1e-5, rtol=1e-5)
    assert jnp.allclose(attn_w, ref_w, atol=1e-5, rtol=1e-5)
    # masked positions must get ~zero weight
    assert float(jnp.max(jnp.where(attn_mask > 0, 0.0, attn_w))) < 1e-12

    print("KERNEL_OK")
</pallas_src>

<mosaic_0001>
module attributes {stable_mosaic.version = 11 : i64} {
  func.func @general_attention_kernel(%arg0: i32, %arg1: memref<2x32xf32, #tpu.memory_space<vmem>>, %arg2: memref<2x32xf32, #tpu.memory_space<vmem>>, %arg3: memref<2x128x32xf32, #tpu.memory_space<vmem>>, %arg4: memref<2x128xf32, #tpu.memory_space<vmem>>, %arg5: memref<32x32xf32, #tpu.memory_space<vmem>>, %arg6: memref<32x32xf32, #tpu.memory_space<vmem>>, %arg7: memref<32x32xf32, #tpu.memory_space<vmem>>, %arg8: memref<2x32xf32, #tpu.memory_space<vmem>>, %arg9: memref<2x128xf32, #tpu.memory_space<vmem>>) attributes {dimension_semantics = [#tpu.dimension_semantics<parallel>], iteration_bounds = array<i64: 1>, scalar_prefetch = 0 : i64, scratch_operands = 0 : i64, tpu.core_type = #tpu.core_type<tc>, window_params = [{transform_indices = @transform_0, window_bounds = array<i64: 2, 32>}, {transform_indices = @transform_1, window_bounds = array<i64: 2, 32>}, {transform_indices = @transform_2, window_bounds = array<i64: 2, 128, 32>}, {transform_indices = @transform_3, window_bounds = array<i64: 2, 128>}, {pipeline_mode = #tpu.pipeline_mode<synchronous>, transform_indices = @transform_4, window_bounds = array<i64: 32, 32>}, {pipeline_mode = #tpu.pipeline_mode<synchronous>, transform_indices = @transform_5, window_bounds = array<i64: 32, 32>}, {pipeline_mode = #tpu.pipeline_mode<synchronous>, transform_indices = @transform_6, window_bounds = array<i64: 32, 32>}, {transform_indices = @transform_7, window_bounds = array<i64: 2, 32>}, {transform_indices = @transform_8, window_bounds = array<i64: 2, 128>}]} {
    %c0 = arith.constant 0 : index
    %c0_0 = arith.constant 0 : index
    %0 = vector.load %arg1[%c0, %c0_0] : memref<2x32xf32, #tpu.memory_space<vmem>>, vector<2x32xf32>
    %c0_1 = arith.constant 0 : index
    %c0_2 = arith.constant 0 : index
    %1 = vector.load %arg2[%c0_1, %c0_2] : memref<2x32xf32, #tpu.memory_space<vmem>>, vector<2x32xf32>
    %c0_3 = arith.constant 0 : index
    %c0_4 = arith.constant 0 : index
    %c0_5 = arith.constant 0 : index
    %2 = vector.load %arg3[%c0_3, %c0_4, %c0_5] : memref<2x128x32xf32, #tpu.memory_space<vmem>>, vector<2x128x32xf32>
    %c0_6 = arith.constant 0 : index
    %c0_7 = arith.constant 0 : index
    %3 = vector.load %arg4[%c0_6, %c0_7] : memref<2x128xf32, #tpu.memory_space<vmem>>, vector<2x128xf32>
    %c0_8 = arith.constant 0 : index
    %c0_9 = arith.constant 0 : index
    %4 = vector.load %arg5[%c0_8, %c0_9] : memref<32x32xf32, #tpu.memory_space<vmem>>, vector<32x32xf32>
    %cst = arith.constant dense<0.000000e+00> : vector<2x32xf32>
    %5 = tpu.matmul %1, %4, %cst {dimension_numbers = #tpu.dot_dimension_numbers<[1], [0], [0], [1], [0, 0, 1, 1], [], []>, precision = #tpu.contract_precision<fp32>} : vector<2x32xf32>, vector<32x32xf32>, vector<2x32xf32> -> vector<2x32xf32>
    %6 = vector.shape_cast %5 : vector<2x32xf32> to vector<2x1x32xf32>
    %7 = vector.broadcast %6 : vector<2x1x32xf32> to vector<2x128x32xf32>
    %8 = arith.mulf %7, %2 : vector<2x128x32xf32>
    %cst_10 = arith.constant dense<0.000000e+00> : vector<2x128xf32>
    %9 = vector.multi_reduction <add>, %8, %cst_10 [2] : vector<2x128x32xf32> to vector<2x128xf32>
    %cst_11 = arith.constant 0.000000e+00 : f32
    %10 = vector.broadcast %cst_11 : f32 to vector<2x128xf32>
    %11 = arith.cmpf ogt, %3, %10 : vector<2x128xf32>
    %cst_12 = arith.constant -1.000000e+20 : f32
    %12 = vector.broadcast %cst_12 : f32 to vector<2x128xf32>
    %13 = arith.select %11, %9, %12 : vector<2x128xi1>, vector<2x128xf32>
    %cst_13 = arith.constant dense<0xFF800000> : vector<2xf32>
    %14 = vector.multi_reduction <maximumf>, %13, %cst_13 [1] : vector<2x128xf32> to vector<2xf32>
    %15 = vector.shape_cast %14 : vector<2xf32> to vector<2x1xf32>
    %16 = vector.broadcast %15 : vector<2x1xf32> to vector<2x128xf32>
    %17 = arith.subf %13, %16 : vector<2x128xf32>
    %18 = math.exp %17 : vector<2x128xf32>
    %cst_14 = arith.constant dense<0.000000e+00> : vector<2xf32>
    %19 = vector.multi_reduction <add>, %18, %cst_14 [1] : vector<2x128xf32> to vector<2xf32>
    %20 = vector.shape_cast %19 : vector<2xf32> to vector<2x1xf32>
    %21 = tpu.reciprocal %20 : vector<2x1xf32> -> vector<2x1xf32>
    %22 = vector.broadcast %21 : vector<2x1xf32> to vector<2x128xf32>
    %23 = arith.mulf %18, %22 : vector<2x128xf32>
    %c0_15 = arith.constant 0 : index
    %c0_16 = arith.constant 0 : index
    %24 = vector.load %arg9[%c0_15, %c0_16] : memref<2x128xf32, #tpu.memory_space<vmem>>, vector<2x128xf32>
    tpu.vector_store %arg9[%c0_15, %c0_16], %23 {strides = array<i32>} : memref<2x128xf32, #tpu.memory_space<vmem>>, vector<2x128xf32>,
    %25 = vector.shape_cast %23 : vector<2x128xf32> to vector<2x128x1xf32>
    %26 = vector.broadcast %25 : vector<2x128x1xf32> to vector<2x128x32xf32>
    %27 = arith.mulf %26, %2 : vector<2x128x32xf32>
    %cst_17 = arith.constant dense<0.000000e+00> : vector<2x32xf32>
    %28 = vector.multi_reduction <add>, %27, %cst_17 [1] : vector<2x128x32xf32> to vector<2x32xf32>
    %c0_18 = arith.constant 0 : index
    %c0_19 = arith.constant 0 : index
    %29 = vector.load %arg6[%c0_18, %c0_19] : memref<32x32xf32, #tpu.memory_space<vmem>>, vector<32x32xf32>
    %cst_20 = arith.constant dense<0.000000e+00> : vector<2x32xf32>
    %30 = tpu.matmul %0, %29, %cst_20 {dimension_numbers = #tpu.dot_dimension_numbers<[1], [0], [0], [1], [0, 0, 1, 1], [], []>, precision = #tpu.contract_precision<fp32>} : vector<2x32xf32>, vector<32x32xf32>, vector<2x32xf32> -> vector<2x32xf32>
    %c0_21 = arith.constant 0 : index
    %c0_22 = arith.constant 0 : index
    %31 = vector.load %arg7[%c0_21, %c0_22] : memref<32x32xf32, #tpu.memory_space<vmem>>, vector<32x32xf32>
    %cst_23 = arith.constant dense<0.000000e+00> : vector<2x32xf32>
    %32 = tpu.matmul %28, %31, %cst_23 {dimension_numbers = #tpu.dot_dimension_numbers<[1], [0], [0], [1], [0, 0, 1, 1], [], []>, precision = #tpu.contract_precision<fp32>} : vector<2x32xf32>, vector<32x32xf32>, vector<2x32xf32> -> vector<2x32xf32>
    %33 = arith.addf %30, %32 : vector<2x32xf32>
    %34 = math.tanh %33 : vector<2x32xf32>
    %c0_24 = arith.constant 0 : index
    %c0_25 = arith.constant 0 : index
    %35 = vector.load %arg8[%c0_24, %c0_25] : memref<2x32xf32, #tpu.memory_space<vmem>>, vector<2x32xf32>
    tpu.vector_store %arg8[%c0_24, %c0_25], %34 {strides = array<i32>} : memref<2x32xf32, #tpu.memory_space<vmem>>, vector<2x32xf32>,
    return
  }
  func.func @transform_0(%arg0: i32) -> (i32, i32) {
    %c0_i32 = arith.constant 0 : i32
    %c0_i32_0 = arith.constant 0 : i32
    return %arg0, %c0_i32 : i32, i32
  }
  func.func @transform_1(%arg0: i32) -> (i32, i32) {
    %c0_i32 = arith.constant 0 : i32
    %c0_i32_0 = arith.constant 0 : i32
    return %arg0, %c0_i32 : i32, i32
  }
  func.func @transform_2(%arg0: i32) -> (i32, i32, i32) {
    %c0_i32 = arith.constant 0 : i32
    %c0_i32_0 = arith.constant 0 : i32
    %c0_i32_1 = arith.constant 0 : i32
    return %arg0, %c0_i32, %c0_i32_0 : i32, i32, i32
  }
  func.func @transform_3(%arg0: i32) -> (i32, i32) {
    %c0_i32 = arith.constant 0 : i32
    %c0_i32_0 = arith.constant 0 : i32
    return %arg0, %c0_i32 : i32, i32
  }
  func.func @transform_4(%arg0: i32) -> (i32, i32) {
    %c0_i32 = arith.constant 0 : i32
    %c0_i32_0 = arith.constant 0 : i32
    %c0_i32_1 = arith.constant 0 : i32
    return %c0_i32, %c0_i32_0 : i32, i32
  }
  func.func @transform_5(%arg0: i32) -> (i32, i32) {
    %c0_i32 = arith.constant 0 : i32
    %c0_i32_0 = arith.constant 0 : i32
    %c0_i32_1 = arith.constant 0 : i32
    return %c0_i32, %c0_i32_0 : i32, i32
  }
  func.func @transform_6(%arg0: i32) -> (i32, i32) {
    %c0_i32 = arith.constant 0 : i32
    %c0_i32_0 = arith.constant 0 : i32
    %c0_i32_1 = arith.constant 0 : i32
    return %c0_i32, %c0_i32_0 : i32, i32
  }
  func.func @transform_7(%arg0: i32) -> (i32, i32) {
    %c0_i32 = arith.constant 0 : i32
    %c0_i32_0 = arith.constant 0 : i32
    return %arg0, %c0_i32 : i32, i32
  }
  func.func @transform_8(%arg0: i32) -> (i32, i32) {
    %c0_i32 = arith.constant 0 : i32
    %c0_i32_0 = arith.constant 0 : i32
    return %arg0, %c0_i32 : i32, i32
  }
}

</mosaic_0001>

<llo_original>
// kernel: tpu_custom_call.1
$region0: #{tpu_custom_call.1}
  #allocation0 [shape = 'u32[]', space=smem, size = 0x4, offset = 0x4, fixed_abs, tag = 'smem constant byte address 0x4 - core index']
  #allocation1 [shape = 'u32[72,128]{1,0:T(1,128)}', space=vmem, size = 0x9000, scoped, tag = 'internal scratch']
  %s0 = inlined_call_operand.vmem [shape: f32[2,32], index: 0, kind: input, shape index: {}]
  %s1 = inlined_call_operand.vmem [shape: f32[2,32], index: 1, kind: input, shape index: {}]
  %s2 = inlined_call_operand.vmem [shape: f32[2,128,32], index: 2, kind: input, shape index: {}]
  %s3 = inlined_call_operand.vmem [shape: f32[2,128], index: 3, kind: input, shape index: {}]
  %s4 = inlined_call_operand.vmem [shape: f32[32,32], index: 4, kind: input, shape index: {}]
  %s5 = inlined_call_operand.vmem [shape: f32[32,32], index: 5, kind: input, shape index: {}]
  %s6 = inlined_call_operand.vmem [shape: f32[32,32], index: 6, kind: input, shape index: {}]
  %s7 = inlined_call_operand.hbm [shape: f32[2,32], index: 7, kind: output, shape index: {0}]
  %s8 = inlined_call_operand.hbm [shape: f32[2,128], index: 8, kind: output, shape index: {1}]
  %9 = xla_tuple %s7, %s8
  %s10 = sld [smem:[#allocation0]]
  $region46: #{tpu_custom_call.1} parent=0
    _
  %s12 = ssub.s32 1, %s10
  %s13 = scalar_select 0, %s12, %s10
  $region1: #{tpu_custom_call.1} parent=0
    #allocation2 [shape = 'u8[1024]{0}', space=vmem, size = 0x400, scoped, tag = 'output window, operand 0, single buffered']
    #allocation3 [shape = 's32[1]{0}', space=sflag, size = 0x4, scoped, tag = 'scoped memory for tpu_custom_call.1']
    #allocation4 [shape = 'u8[1024]{0}', space=vmem, size = 0x400, scoped, tag = 'output window, operand 1, single buffered']
    #allocation5 [shape = 's32[1]{0}', space=sflag, size = 0x4, scoped, tag = 'scoped memory for tpu_custom_call.1']
    %14 = vsyncpa [#allocation3], 0
    %15 = vsyncpa [#allocation5], 0
    // Predicated region
    $region2: #{tpu_custom_call.1} parent=1 // pred_check
      _
    $region3: #{tpu_custom_call.1} parent=1 // pred_check_branch
      %17 = sbr.rel (0) target = $region5
    $region4: #{tpu_custom_call.1} parent=1 // pred_region
      _
    $region5: #{tpu_custom_call.1} parent=1 // pred_fallthru
      _
    // Predicated region
    $region6: #{tpu_custom_call.1} parent=1 // pred_check
      _
    $region7: #{tpu_custom_call.1} parent=1 // pred_check_branch
      %19 = sbr.rel (0) target = $region9
    $region8: #{tpu_custom_call.1} parent=1 // pred_region
      _
    $region9: #{tpu_custom_call.1} parent=1 // pred_fallthru
      _
    // Predicated region
    $region10: #{tpu_custom_call.1} parent=1 // pred_check
      _
    $region11: #{tpu_custom_call.1} parent=1 // pred_check_branch
      %21 = sbr.rel (0) target = $region13
    $region12: #{tpu_custom_call.1} parent=1 // pred_region
      _
    $region13: #{tpu_custom_call.1} parent=1 // pred_fallthru
      _
    // Predicated region
    $region14: #{tpu_custom_call.1} parent=1 // pred_check
      _
    $region15: #{tpu_custom_call.1} parent=1 // pred_check_branch
      %23 = sbr.rel (0) target = $region17
    $region16: #{tpu_custom_call.1} parent=1 // pred_region
      _
    $region17: #{tpu_custom_call.1} parent=1 // pred_fallthru
      _
    // Predicated region
    $region18: #{tpu_custom_call.1} parent=1 // pred_check
      _
    $region19: #{tpu_custom_call.1} parent=1 // pred_check_branch
      %25 = sbr.rel (0) target = $region21
    $region20: #{tpu_custom_call.1} parent=1 // pred_region
      _
    $region21: #{tpu_custom_call.1} parent=1 // pred_fallthru
      _
    // Predicated region
    $region22: #{tpu_custom_call.1} parent=1 // pred_check
      _
    $region23: #{tpu_custom_call.1} parent=1 // pred_check_branch
      %27 = sbr.rel (0) target = $region25
    $region24: #{tpu_custom_call.1} parent=1 // pred_region
      _
    $region25: #{tpu_custom_call.1} parent=1 // pred_fallthru
      _
    // Predicated region
    $region26: #{tpu_custom_call.1} parent=1 // pred_check
      _
    $region27: #{tpu_custom_call.1} parent=1 // pred_check_branch
      %29 = sbr.rel (0) target = $region29
    $region28: #{tpu_custom_call.1} parent=1 // pred_region
      _
    $region29: #{tpu_custom_call.1} parent=1 // pred_fallthru
      _
    %v30 = vld [vmem:[%s0] sm:$0x3]
    %v31 = vld [vmem:[%s1] sm:$0x3]
    %v32 = vld [vmem:[%s2] sm:$0xff]
    %v33 = vld [vmem:[%s2 + $0x8] sm:$0xff]
    %v34 = vld [vmem:[%s2 + $0x10] sm:$0xff]
    %v35 = vld [vmem:[%s2 + $0x18] sm:$0xff]
    %v36 = vld [vmem:[%s2 + $0x20] sm:$0xff]
    %v37 = vld [vmem:[%s2 + $0x28] sm:$0xff]
    %v38 = vld [vmem:[%s2 + $0x30] sm:$0xff]
    %v39 = vld [vmem:[%s2 + $0x38] sm:$0xff]
    %v40 = vld [vmem:[%s2 + $0x40] sm:$0xff]
    %v41 = vld [vmem:[%s2 + $0x48] sm:$0xff]
    %v42 = vld [vmem:[%s2 + $0x50] sm:$0xff]
    %v43 = vld [vmem:[%s2 + $0x58] sm:$0xff]
    %v44 = vld [vmem:[%s2 + $0x60] sm:$0xff]
    %v45 = vld [vmem:[%s2 + $0x68] sm:$0xff]
    %v46 = vld [vmem:[%s2 + $0x70] sm:$0xff]
    %v47 = vld [vmem:[%s2 + $0x78] sm:$0xff]
    %v48 = vld [vmem:[%s2 + $0x80] sm:$0xff]
    %v49 = vld [vmem:[%s2 + $0x88] sm:$0xff]
    %v50 = vld [vmem:[%s2 + $0x90] sm:$0xff]
    %v51 = vld [vmem:[%s2 + $0x98] sm:$0xff]
    %v52 = vld [vmem:[%s2 + $0xa0] sm:$0xff]
    %v53 = vld [vmem:[%s2 + $0xa8] sm:$0xff]
    %v54 = vld [vmem:[%s2 + $0xb0] sm:$0xff]
    %v55 = vld [vmem:[%s2 + $0xb8] sm:$0xff]
    %v56 = vld [vmem:[%s2 + $0xc0] sm:$0xff]
    %v57 = vld [vmem:[%s2 + $0xc8] sm:$0xff]
    %v58 = vld [vmem:[%s2 + $0xd0] sm:$0xff]
    %v59 = vld [vmem:[%s2 + $0xd8] sm:$0xff]
    %v60 = vld [vmem:[%s2 + $0xe0] sm:$0xff]
    %v61 = vld [vmem:[%s2 + $0xe8] sm:$0xff]
    %v62 = vld [vmem:[%s2 + $0xf0] sm:$0xff]
    %v63 = vld [vmem:[%s2 + $0xf8] sm:$0xff]
    %v64 = vld [vmem:[%s3] sm:$0x3]
    %v65 = vld [vmem:[%s4] sm:$0xff]
    %v66 = vld [vmem:[%s4 + $0x8] sm:$0xff]
    %v67 = vld [vmem:[%s4 + $0x10] sm:$0xff]
    %v68 = vld [vmem:[%s4 + $0x18] sm:$0xff]
    %vm69 = vcmask 261120
    %v71 = vsel %vm69, %v31, 0
    %73 = vmatpush.msra.mxu0 0.0
    %74 = vmatpush.msra.mxu0 0.0
    %75 = vmatpush.msra.mxu0 0.0
    %76 = vmatpush.msra.mxu0 0.0
    %77 = vmatpush.msra.mxu0 0.0
    %78 = vmatpush.msra.mxu0 0.0
    %79 = vmatpush.msra.mxu0 0.0
    %80 = vmatpush.msra.mxu0 0.0
    %81 = vmatpush.msra.mxu0 0.0
    %82 = vmatpush.msra.mxu0 0.0
    %83 = vmatpush.msra.mxu0 0.0
    %84 = vmatpush.msra.mxu0 0.0
    %v85 = vand.u32 %v68, 4294901760
    %86 = vmatpush.msra.mxu0 %v85
    %v87 = vand.u32 %v67, 4294901760
    %88 = vmatpush.msra.mxu0 %v87
    %v89 = vand.u32 %v66, 4294901760
    %90 = vmatpush.msra.mxu0 %v89
    %v91 = vand.u32 %v65, 4294901760
    %92 = vmatpush.msra.mxu0 %v91
    %v93 = vand.u32 %v71, 4294901760
    %v94 = vsub.f32 %v71, %v93
    %v95 = vand.u32 %v94, 4294901760
    %v96 = vsub.f32 %v94, %v95
    %v97 = vand.u32 %v96, 4294901760
    %98 = vmatmul.f32.gmra.mxu0 %v97
    %v99 = vpop.f32.mrf.mxu0
    %v100 = vadd.f32 0.0, %v99
    %101 = vdwg.mxu0
    %102 = vmatpush.msra.mxu0 0.0
    %103 = vmatpush.msra.mxu0 0.0
    %104 = vmatpush.msra.mxu0 0.0
    %105 = vmatpush.msra.mxu0 0.0
    %106 = vmatpush.msra.mxu0 0.0
    %107 = vmatpush.msra.mxu0 0.0
    %108 = vmatpush.msra.mxu0 0.0
    %109 = vmatpush.msra.mxu0 0.0
    %110 = vmatpush.msra.mxu0 0.0
    %111 = vmatpush.msra.mxu0 0.0
    %112 = vmatpush.msra.mxu0 0.0
    %113 = vmatpush.msra.mxu0 0.0
    %v114 = vand.u32 %v68, 4294901760
    %v115 = vsub.f32 %v68, %v114
    %v116 = vand.u32 %v115, 4294901760
    %v117 = vsub.f32 %v115, %v116
    %v118 = vand.u32 %v117, 4294901760
    %119 = vmatpush.msra.mxu0 %v118
    %v120 = vand.u32 %v67, 4294901760
    %v121 = vsub.f32 %v67, %v120
    %v122 = vand.u32 %v121, 4294901760
    %v123 = vsub.f32 %v121, %v122
    %v124 = vand.u32 %v123, 4294901760
    %125 = vmatpush.msra.mxu0 %v124
    %v126 = vand.u32 %v66, 4294901760
    %v127 = vsub.f32 %v66, %v126
    %v128 = vand.u32 %v127, 4294901760
    %v129 = vsub.f32 %v127, %v128
    %v130 = vand.u32 %v129, 4294901760
    %131 = vmatpush.msra.mxu0 %v130
    %v132 = vand.u32 %v65, 4294901760
    %v133 = vsub.f32 %v65, %v132
    %v134 = vand.u32 %v133, 4294901760
    %v135 = vsub.f32 %v133, %v134
    %v136 = vand.u32 %v135, 4294901760
    %137 = vmatpush.msra.mxu0 %v136
    %v138 = vand.u32 %v71, 4294901760
    %139 = vmatmul.f32.gmra.mxu0 %v138
    %v140 = vpop.f32.mrf.mxu0
    %v141 = vadd.f32 %v100, %v140
    %142 = vdwg.mxu0
    %143 = vmatpush.msra.mxu0 0.0
    %144 = vmatpush.msra.mxu0 0.0
    %145 = vmatpush.msra.mxu0 0.0
    %146 = vmatpush.msra.mxu0 0.0
    %147 = vmatpush.msra.mxu0 0.0
    %148 = vmatpush.msra.mxu0 0.0
    %149 = vmatpush.msra.mxu0 0.0
    %150 = vmatpush.msra.mxu0 0.0
    %151 = vmatpush.msra.mxu0 0.0
    %152 = vmatpush.msra.mxu0 0.0
    %153 = vmatpush.msra.mxu0 0.0
    %154 = vmatpush.msra.mxu0 0.0
    %v155 = vand.u32 %v68, 4294901760
    %v156 = vsub.f32 %v68, %v155
    %157 = vmatpush.msra.mxu0 %v156
    %v158 = vand.u32 %v67, 4294901760
    %v159 = vsub.f32 %v67, %v158
    %160 = vmatpush.msra.mxu0 %v159
    %v161 = vand.u32 %v66, 4294901760
    %v162 = vsub.f32 %v66, %v161
    %163 = vmatpush.msra.mxu0 %v162
    %v164 = vand.u32 %v65, 4294901760
    %v165 = vsub.f32 %v65, %v164
    %166 = vmatpush.msra.mxu0 %v165
    %v167 = vand.u32 %v71, 4294901760
    %v168 = vsub.f32 %v71, %v167
    %169 = vmatmul.f32.gmra.mxu0 %v168
    %v170 = vpop.f32.mrf.mxu0
    %v171 = vadd.f32 %v141, %v170
    %172 = vdwg.mxu0
    %173 = vmatpush.msra.mxu0 0.0
    %174 = vmatpush.msra.mxu0 0.0
    %175 = vmatpush.msra.mxu0 0.0
    %176 = vmatpush.msra.mxu0 0.0
    %177 = vmatpush.msra.mxu0 0.0
    %178 = vmatpush.msra.mxu0 0.0
    %179 = vmatpush.msra.mxu0 0.0
    %180 = vmatpush.msra.mxu0 0.0
    %181 = vmatpush.msra.mxu0 0.0
    %182 = vmatpush.msra.mxu0 0.0
    %183 = vmatpush.msra.mxu0 0.0
    %184 = vmatpush.msra.mxu0 0.0
    %v185 = vand.u32 %v68, 4294901760
    %186 = vmatpush.msra.mxu0 %v185
    %v187 = vand.u32 %v67, 4294901760
    %188 = vmatpush.msra.mxu0 %v187
    %v189 = vand.u32 %v66, 4294901760
    %190 = vmatpush.msra.mxu0 %v189
    %v191 = vand.u32 %v65, 4294901760
    %192 = vmatpush.msra.mxu0 %v191
    %v193 = vand.u32 %v71, 4294901760
    %v194 = vsub.f32 %v71, %v193
    %v195 = vand.u32 %v194, 4294901760
    %196 = vmatmul.f32.gmra.mxu0 %v195
    %v197 = vpop.f32.mrf.mxu0
    %v198 = vadd.f32 %v171, %v197
    %199 = vdwg.mxu0
    %200 = vmatpush.msra.mxu0 0.0
    %201 = vmatpush.msra.mxu0 0.0
    %202 = vmatpush.msra.mxu0 0.0
    %203 = vmatpush.msra.mxu0 0.0
    %204 = vmatpush.msra.mxu0 0.0
    %205 = vmatpush.msra.mxu0 0.0
    %206 = vmatpush.msra.mxu0 0.0
    %207 = vmatpush.msra.mxu0 0.0
    %208 = vmatpush.msra.mxu0 0.0
    %209 = vmatpush.msra.mxu0 0.0
    %210 = vmatpush.msra.mxu0 0.0
    %211 = vmatpush.msra.mxu0 0.0
    %v212 = vand.u32 %v68, 4294901760
    %v213 = vsub.f32 %v68, %v212
    %v214 = vand.u32 %v213, 4294901760
    %215 = vmatpush.msra.mxu0 %v214
    %v216 = vand.u32 %v67, 4294901760
    %v217 = vsub.f32 %v67, %v216
    %v218 = vand.u32 %v217, 4294901760
    %219 = vmatpush.msra.mxu0 %v218
    %v220 = vand.u32 %v66, 4294901760
    %v221 = vsub.f32 %v66, %v220
    %v222 = vand.u32 %v221, 4294901760
    %223 = vmatpush.msra.mxu0 %v222
    %v224 = vand.u32 %v65, 4294901760
    %v225 = vsub.f32 %v65, %v224
    %v226 = vand.u32 %v225, 4294901760
    %227 = vmatpush.msra.mxu0 %v226
    %v228 = vand.u32 %v71, 4294901760
    %229 = vmatmul.f32.gmra.mxu0 %v228
    %v230 = vpop.f32.mrf.mxu0
    %v231 = vadd.f32 %v198, %v230
    %232 = vdwg.mxu0
    %233 = vmatpush.msra.mxu0 0.0
    %234 = vmatpush.msra.mxu0 0.0
    %235 = vmatpush.msra.mxu0 0.0
    %236 = vmatpush.msra.mxu0 0.0
    %237 = vmatpush.msra.mxu0 0.0
    %238 = vmatpush.msra.mxu0 0.0
    %239 = vmatpush.msra.mxu0 0.0
    %240 = vmatpush.msra.mxu0 0.0
    %241 = vmatpush.msra.mxu0 0.0
    %242 = vmatpush.msra.mxu0 0.0
    %243 = vmatpush.msra.mxu0 0.0
    %244 = vmatpush.msra.mxu0 0.0
    %v245 = vand.u32 %v68, 4294901760
    %246 = vmatpush.msra.mxu0 %v245
    %v247 = vand.u32 %v67, 4294901760
    %248 = vmatpush.msra.mxu0 %v247
    %v249 = vand.u32 %v66, 4294901760
    %250 = vmatpush.msra.mxu0 %v249
    %v251 = vand.u32 %v65, 4294901760
    %252 = vmatpush.msra.mxu0 %v251
    %v253 = vand.u32 %v71, 4294901760
    %254 = vmatmul.f32.gmra.mxu0 %v253
    %v255 = vpop.f32.mrf.mxu0
    %v256 = vadd.f32 %v231, %v255
    %257 = vdwg.mxu0
    %v259 = vrot.slane %v256, 1
    %v260 = vperm.slane %v256, 0
    %v261 = vperm.slane %v259, 0
    %v264 = vmul.f32 %v260, %v32
    %v265 = vmul.f32 %v260, %v33
    %v266 = vmul.f32 %v260, %v34
    %v267 = vmul.f32 %v260, %v35
    %v268 = vmul.f32 %v260, %v36
    %v269 = vmul.f32 %v260, %v37
    %v270 = vmul.f32 %v260, %v38
    %v271 = vmul.f32 %v260, %v39
    %v272 = vmul.f32 %v260, %v40
    %v273 = vmul.f32 %v260, %v41
    %v274 = vmul.f32 %v260, %v42
    %v275 = vmul.f32 %v260, %v43
    %v276 = vmul.f32 %v260, %v44
    %v277 = vmul.f32 %v260, %v45
    %v278 = vmul.f32 %v260, %v46
    %v279 = vmul.f32 %v260, %v47
    %v280 = vmul.f32 %v261, %v48
    %v281 = vmul.f32 %v261, %v49
    %v282 = vmul.f32 %v261, %v50
    %v283 = vmul.f32 %v261, %v51
    %v284 = vmul.f32 %v261, %v52
    %v285 = vmul.f32 %v261, %v53
    %v286 = vmul.f32 %v261, %v54
    %v287 = vmul.f32 %v261, %v55
    %v288 = vmul.f32 %v261, %v56
    %v289 = vmul.f32 %v261, %v57
    %v290 = vmul.f32 %v261, %v58
    %v291 = vmul.f32 %v261, %v59
    %v292 = vmul.f32 %v261, %v60
    %v293 = vmul.f32 %v261, %v61
    %v294 = vmul.f32 %v261, %v62
    %v295 = vmul.f32 %v261, %v63
    %v296 = vsel %vm69, %v264, 0.0
    %297 = vadd.xlane.f32.xlu0 %v296
    %v298 = vpop.xlane.xlu0 %297
    %v299 = vsel %vm69, %v265, 0.0
    %300 = vadd.xlane.f32.xlu0 %v299
    %v301 = vpop.xlane.xlu0 %300
    %v302 = vsel %vm69, %v266, 0.0
    %303 = vadd.xlane.f32.xlu0 %v302
    %v304 = vpop.xlane.xlu0 %303
    %v305 = vsel %vm69, %v267, 0.0
    %306 = vadd.xlane.f32.xlu0 %v305
    %v307 = vpop.xlane.xlu0 %306
    %v308 = vsel %vm69, %v268, 0.0
    %309 = vadd.xlane.f32.xlu0 %v308
    %v310 = vpop.xlane.xlu0 %309
    %v311 = vsel %vm69, %v269, 0.0
    %312 = vadd.xlane.f32.xlu0 %v311
    %v313 = vpop.xlane.xlu0 %312
    %v314 = vsel %vm69, %v270, 0.0
    %315 = vadd.xlane.f32.xlu0 %v314
    %v316 = vpop.xlane.xlu0 %315
    %v317 = vsel %vm69, %v271, 0.0
    %318 = vadd.xlane.f32.xlu0 %v317
    %v319 = vpop.xlane.xlu0 %318
    %v320 = vsel %vm69, %v272, 0.0
    %321 = vadd.xlane.f32.xlu0 %v320
    %v322 = vpop.xlane.xlu0 %321
    %v323 = vsel %vm69, %v273, 0.0
    %324 = vadd.xlane.f32.xlu0 %v323
    %v325 = vpop.xlane.xlu0 %324
    %v326 = vsel %vm69, %v274, 0.0
    %327 = vadd.xlane.f32.xlu0 %v326
    %v328 = vpop.xlane.xlu0 %327
    %v329 = vsel %vm69, %v275, 0.0
    %330 = vadd.xlane.f32.xlu0 %v329
    %v331 = vpop.xlane.xlu0 %330
    %v332 = vsel %vm69, %v276, 0.0
    %333 = vadd.xlane.f32.xlu0 %v332
    %v334 = vpop.xlane.xlu0 %333
    %v335 = vsel %vm69, %v277, 0.0
    %336 = vadd.xlane.f32.xlu0 %v335
    %v337 = vpop.xlane.xlu0 %336
    %v338 = vsel %vm69, %v278, 0.0
    %339 = vadd.xlane.f32.xlu0 %v338
    %v340 = vpop.xlane.xlu0 %339
    %v341 = vsel %vm69, %v279, 0.0
    %342 = vadd.xlane.f32.xlu0 %v341
    %v343 = vpop.xlane.xlu0 %342
    %v344 = vsel %vm69, %v280, 0.0
    %345 = vadd.xlane.f32.xlu0 %v344
    %v346 = vpop.xlane.xlu0 %345
    %v347 = vsel %vm69, %v281, 0.0
    %348 = vadd.xlane.f32.xlu0 %v347
    %v349 = vpop.xlane.xlu0 %348
    %v350 = vsel %vm69, %v282, 0.0
    %351 = vadd.xlane.f32.xlu0 %v350
    %v352 = vpop.xlane.xlu0 %351
    %v353 = vsel %vm69, %v283, 0.0
    %354 = vadd.xlane.f32.xlu0 %v353
    %v355 = vpop.xlane.xlu0 %354
    %v356 = vsel %vm69, %v284, 0.0
    %357 = vadd.xlane.f32.xlu0 %v356
    %v358 = vpop.xlane.xlu0 %357
    %v359 = vsel %vm69, %v285, 0.0
    %360 = vadd.xlane.f32.xlu0 %v359
    %v361 = vpop.xlane.xlu0 %360
    %v362 = vsel %vm69, %v286, 0.0
    %363 = vadd.xlane.f32.xlu0 %v362
    %v364 = vpop.xlane.xlu0 %363
    %v365 = vsel %vm69, %v287, 0.0
    %366 = vadd.xlane.f32.xlu0 %v365
    %v367 = vpop.xlane.xlu0 %366
    %v368 = vsel %vm69, %v288, 0.0
    %369 = vadd.xlane.f32.xlu0 %v368
    %v370 = vpop.xlane.xlu0 %369
    %v371 = vsel %vm69, %v289, 0.0
    %372 = vadd.xlane.f32.xlu0 %v371
    %v373 = vpop.xlane.xlu0 %372
    %v374 = vsel %vm69, %v290, 0.0
    %375 = vadd.xlane.f32.xlu0 %v374
    %v376 = vpop.xlane.xlu0 %375
    %v377 = vsel %vm69, %v291, 0.0
    %378 = vadd.xlane.f32.xlu0 %v377
    %v379 = vpop.xlane.xlu0 %378
    %v380 = vsel %vm69, %v292, 0.0
    %381 = vadd.xlane.f32.xlu0 %v380
    %v382 = vpop.xlane.xlu0 %381
    %v383 = vsel %vm69, %v293, 0.0
    %384 = vadd.xlane.f32.xlu0 %v383
    %v385 = vpop.xlane.xlu0 %384
    %v386 = vsel %vm69, %v294, 0.0
    %387 = vadd.xlane.f32.xlu0 %v386
    %v388 = vpop.xlane.xlu0 %387
    %v389 = vsel %vm69, %v295, 0.0
    %390 = vadd.xlane.f32.xlu0 %v389
    %v391 = vpop.xlane.xlu0 %390
    %vm392 = vcmp.gt.f32.partialorder %v64, 0.0
    %v425 = vlaneseq
    %v426 = vand.u32 %v425, 127
    %v427 = vperm.slane %v298, %v426
    %v428 = vadd.s32 %v426, 4294967288
    %v429 = vperm.slane %v301, %v428
    %vm430 = vcmask 130112
    %v431 = vsel %vm430, %v429, %v427
    %v432 = vadd.s32 %v426, 4294967280
    %v433 = vperm.slane %v304, %v432
    %vm434 = vcmask 195712
    %v435 = vsel %vm434, %v433, %v431
    %v436 = vadd.s32 %v426, 4294967272
    %v437 = vperm.slane %v307, %v436
    %vm438 = vcmask 261312
    %v439 = vsel %vm438, %v437, %v435
    %v440 = vadd.s32 %v426, 4294967264
    %v441 = vperm.slane %v310, %v440
    %vm442 = vcmask 326912
    %v443 = vsel %vm442, %v441, %v439
    %v444 = vadd.s32 %v426, 4294967256
    %v445 = vperm.slane %v313, %v444
    %vm446 = vcmask 392512
    %v447 = vsel %vm446, %v445, %v443
    %v448 = vadd.s32 %v426, 4294967248
    %v449 = vperm.slane %v316, %v448
    %vm450 = vcmask 458112
    %v451 = vsel %vm450, %v449, %v447
    %v452 = vadd.s32 %v426, 4294967240
    %v453 = vperm.slane %v319, %v452
    %vm454 = vcmask 523712
    %v455 = vsel %vm454, %v453, %v451
    %v456 = vadd.s32 %v426, 4294967232
    %v457 = vperm.slane %v322, %v456
    %vm458 = vcmask 589312
    %v459 = vsel %vm458, %v457, %v455
    %v460 = vadd.s32 %v426, 4294967224
    %v461 = vperm.slane %v325, %v460
    %vm462 = vcmask 654912
    %v463 = vsel %vm462, %v461, %v459
    %v464 = vadd.s32 %v426, 4294967216
    %v465 = vperm.slane %v328, %v464
    %vm466 = vcmask 720512
    %v467 = vsel %vm466, %v465, %v463
    %v468 = vadd.s32 %v426, 4294967208
    %v469 = vperm.slane %v331, %v468
    %vm470 = vcmask 786112
    %v471 = vsel %vm470, %v469, %v467
    %v472 = vadd.s32 %v426, 4294967200
    %v473 = vperm.slane %v334, %v472
    %vm474 = vcmask 851712
    %v475 = vsel %vm474, %v473, %v471
    %v476 = vadd.s32 %v426, 4294967192
    %v477 = vperm.slane %v337, %v476
    %vm478 = vcmask 917312
    %v479 = vsel %vm478, %v477, %v475
    %v480 = vadd.s32 %v426, 4294967184
    %v481 = vperm.slane %v340, %v480
    %vm482 = vcmask 982912
    %v483 = vsel %vm482, %v481, %v479
    %v484 = vadd.s32 %v426, 4294967176
    %v485 = vperm.slane %v343, %v484
    %vm486 = vcmask 1048512
    %v487 = vsel %vm486, %v485, %v483
    %v488 = vperm.slane %v346, %v426
    %v489 = vperm.slane %v349, %v428
    %v490 = vsel %vm430, %v489, %v488
    %v491 = vperm.slane %v352, %v432
    %v492 = vsel %vm434, %v491, %v490
    %v493 = vperm.slane %v355, %v436
    %v494 = vsel %vm438, %v493, %v492
    %v495 = vperm.slane %v358, %v440
    %v496 = vsel %vm442, %v495, %v494
    %v497 = vperm.slane %v361, %v444
    %v498 = vsel %vm446, %v497, %v496
    %v499 = vperm.slane %v364, %v448
    %v500 = vsel %vm450, %v499, %v498
    %v501 = vperm.slane %v367, %v452
    %v502 = vsel %vm454, %v501, %v500
    %v503 = vperm.slane %v370, %v456
    %v504 = vsel %vm458, %v503, %v502
    %v505 = vperm.slane %v373, %v460
    %v506 = vsel %vm462, %v505, %v504
    %v507 = vperm.slane %v376, %v464
    %v508 = vsel %vm466, %v507, %v506
    %v509 = vperm.slane %v379, %v468
    %v510 = vsel %vm470, %v509, %v508
    %v511 = vperm.slane %v382, %v472
    %v512 = vsel %vm474, %v511, %v510
    %v513 = vperm.slane %v385, %v476
    %v514 = vsel %vm478, %v513, %v512
    %v515 = vperm.slane %v388, %v480
    %v516 = vsel %vm482, %v515, %v514
    %v517 = vperm.slane %v391, %v484
    %v518 = vsel %vm486, %v517, %v516
    %vm519 = vcmask 1041409
    %v520 = vsel %vm519, %v518, %v487
    %v522 = vsel %vm392, %v520, -1e+20
    %vm523 = vcmask 1041408
    %v524 = vsel %vm523, %v522, -inf
    %525 = vmax.xlane.f32.xlu0 %v524
    %v526 = vpop.xlane.xlu0 %525
    %v527 = vsub.f32 %v522, %v526
    %v528 = vmul.f32 %v527, 1.442695
    %v529 = vpow.pop %v528
    %v530 = vsel %vm523, %v529, 0.0
    %531 = vadd.xlane.f32.xlu0 %v530
    %v532 = vpop.xlane.xlu0 %531
    %v533 = vrcp.pop %v532
    %v534 = vmul.f32 %v532, %v533
    %v535 = vsub.f32 1.0, %v534
    %v536 = vmul.f32 %v533, %v535
    %v537 = vadd.f32 %v533, %v536
    %vm538 = vweird.f32 %v532
    %vm539 = vweird.f32 %v533
    %vm540 = vmor %vm538, %vm539
    %v541 = vsel %vm540, %v533, %v537
    %v542 = vand.u32 2147483647, %v532
    %vm543 = vcmp.eq.f32.partialorder %v542, 8.507059e+37
    %v544 = vand.u32 %v532, 2147483648
    %v545 = vor.u32 1.1754944e-38, %v544
    %v546 = vsel %vm543, %v545, %v541
    %v547 = vmul.f32 %v529, %v546
    %548 = vst [vmem:[#allocation4] sm:$0x3] %v547
    %v549 = vperm.slane %v547, 0
    %v550 = vlaneseq
    %v551 = vshrl.u32 %v550, 7
    %553 = vset.pattern.permute.xlu0 %v551
    %554 = vperm.xlu0 %553, %v549
    %v555 = vpop.permute.xlu0 %554
    %v556 = vlaneseq
    %v557 = vshrl.u32 %v556, 7
    %v558 = vadd.s32 %v557, 8
    %559 = vset.pattern.permute.xlu0 %v558
    %560 = vperm.xlu0 %559, %v549
    %v561 = vpop.permute.xlu0 %560
    %v562 = vlaneseq
    %v563 = vshrl.u32 %v562, 7
    %v564 = vadd.s32 %v563, 16
    %565 = vset.pattern.permute.xlu0 %v564
    %566 = vperm.xlu0 %565, %v549
    %v567 = vpop.permute.xlu0 %566
    %v568 = vlaneseq
    %v569 = vshrl.u32 %v568, 7
    %v570 = vadd.s32 %v569, 24
    %571 = vset.pattern.permute.xlu0 %v570
    %572 = vperm.xlu0 %571, %v549
    %v573 = vpop.permute.xlu0 %572
    %v574 = vlaneseq
    %v575 = vshrl.u32 %v574, 7
    %v576 = vadd.s32 %v575, 32
    %577 = vset.pattern.permute.xlu0 %v576
    %578 = vperm.xlu0 %577, %v549
    %v579 = vpop.permute.xlu0 %578
    %v580 = vlaneseq
    %v581 = vshrl.u32 %v580, 7
    %v582 = vadd.s32 %v581, 40
    %583 = vset.pattern.permute.xlu0 %v582
    %584 = vperm.xlu0 %583, %v549
    %v585 = vpop.permute.xlu0 %584
    %v586 = vlaneseq
    %v587 = vshrl.u32 %v586, 7
    %v588 = vadd.s32 %v587, 48
    %589 = vset.pattern.permute.xlu0 %v588
    %590 = vperm.xlu0 %589, %v549
    %v591 = vpop.permute.xlu0 %590
    %v592 = vlaneseq
    %v593 = vshrl.u32 %v592, 7
    %v594 = vadd.s32 %v593, 56
    %595 = vset.pattern.permute.xlu0 %v594
    %596 = vperm.xlu0 %595, %v549
    %v597 = vpop.permute.xlu0 %596
    %v598 = vlaneseq
    %v599 = vshrl.u32 %v598, 7
    %v600 = vadd.s32 %v599, 64
    %601 = vset.pattern.permute.xlu0 %v600
    %602 = vperm.xlu0 %601, %v549
    %v603 = vpop.permute.xlu0 %602
    %v604 = vlaneseq
    %v605 = vshrl.u32 %v604, 7
    %v606 = vadd.s32 %v605, 72
    %607 = vset.pattern.permute.xlu0 %v606
    %608 = vperm.xlu0 %607, %v549
    %v609 = vpop.permute.xlu0 %608
    %v610 = vlaneseq
    %v611 = vshrl.u32 %v610, 7
    %v612 = vadd.s32 %v611, 80
    %613 = vset.pattern.permute.xlu0 %v612
    %614 = vperm.xlu0 %613, %v549
    %v615 = vpop.permute.xlu0 %614
    %v616 = vlaneseq
    %v617 = vshrl.u32 %v616, 7
    %v618 = vadd.s32 %v617, 88
    %619 = vset.pattern.permute.xlu0 %v618
    %620 = vperm.xlu0 %619, %v549
    %v621 = vpop.permute.xlu0 %620
    %v622 = vlaneseq
    %v623 = vshrl.u32 %v622, 7
    %v624 = vadd.s32 %v623, 96
    %625 = vset.pattern.permute.xlu0 %v624
    %626 = vperm.xlu0 %625, %v549
    %v627 = vpop.permute.xlu0 %626
    %v628 = vlaneseq
    %v629 = vshrl.u32 %v628, 7
    %v630 = vadd.s32 %v629, 104
    %631 = vset.pattern.permute.xlu0 %v630
    %632 = vperm.xlu0 %631, %v549
    %v633 = vpop.permute.xlu0 %632
    %v634 = vlaneseq
    %v635 = vshrl.u32 %v634, 7
    %v636 = vadd.s32 %v635, 112
    %637 = vset.pattern.permute.xlu0 %v636
    %638 = vperm.xlu0 %637, %v549
    %v639 = vpop.permute.xlu0 %638
    %v640 = vlaneseq
    %v641 = vshrl.u32 %v640, 7
    %v642 = vadd.s32 %v641, 120
    %643 = vset.pattern.permute.xlu0 %v642
    %644 = vperm.xlu0 %643, %v549
    %v645 = vpop.permute.xlu0 %644
    %v646 = vperm.slane %v547, 1
    %v647 = vlaneseq
    %v648 = vshrl.u32 %v647, 7
    %650 = vset.pattern.permute.xlu0 %v648
    %651 = vperm.xlu0 %650, %v646
    %v652 = vpop.permute.xlu0 %651
    %v653 = vlaneseq
    %v654 = vshrl.u32 %v653, 7
    %v655 = vadd.s32 %v654, 8
    %656 = vset.pattern.permute.xlu0 %v655
    %657 = vperm.xlu0 %656, %v646
    %v658 = vpop.permute.xlu0 %657
    %v659 = vlaneseq
    %v660 = vshrl.u32 %v659, 7
    %v661 = vadd.s32 %v660, 16
    %662 = vset.pattern.permute.xlu0 %v661
    %663 = vperm.xlu0 %662, %v646
    %v664 = vpop.permute.xlu0 %663
    %v665 = vlaneseq
    %v666 = vshrl.u32 %v665, 7
    %v667 = vadd.s32 %v666, 24
    %668 = vset.pattern.permute.xlu0 %v667
    %669 = vperm.xlu0 %668, %v646
    %v670 = vpop.permute.xlu0 %669
    %v671 = vlaneseq
    %v672 = vshrl.u32 %v671, 7
    %v673 = vadd.s32 %v672, 32
    %674 = vset.pattern.permute.xlu0 %v673
    %675 = vperm.xlu0 %674, %v646
    %v676 = vpop.permute.xlu0 %675
    %v677 = vlaneseq
    %v678 = vshrl.u32 %v677, 7
    %v679 = vadd.s32 %v678, 40
    %680 = vset.pattern.permute.xlu0 %v679
    %681 = vperm.xlu0 %680, %v646
    %v682 = vpop.permute.xlu0 %681
    %v683 = vlaneseq
    %v684 = vshrl.u32 %v683, 7
    %v685 = vadd.s32 %v684, 48
    %686 = vset.pattern.permute.xlu0 %v685
    %687 = vperm.xlu0 %686, %v646
    %v688 = vpop.permute.xlu0 %687
    %v689 = vlaneseq
    %v690 = vshrl.u32 %v689, 7
    %v691 = vadd.s32 %v690, 56
    %692 = vset.pattern.permute.xlu0 %v691
    %693 = vperm.xlu0 %692, %v646
    %v694 = vpop.permute.xlu0 %693
    %v695 = vlaneseq
    %v696 = vshrl.u32 %v695, 7
    %v697 = vadd.s32 %v696, 64
    %698 = vset.pattern.permute.xlu0 %v697
    %699 = vperm.xlu0 %698, %v646
    %v700 = vpop.permute.xlu0 %699
    %v701 = vlaneseq
    %v702 = vshrl.u32 %v701, 7
    %v703 = vadd.s32 %v702, 72
    %704 = vset.pattern.permute.xlu0 %v703
    %705 = vperm.xlu0 %704, %v646
    %v706 = vpop.permute.xlu0 %705
    %v707 = vlaneseq
    %v708 = vshrl.u32 %v707, 7
    %v709 = vadd.s32 %v708, 80
    %710 = vset.pattern.permute.xlu0 %v709
    %711 = vperm.xlu0 %710, %v646
    %v712 = vpop.permute.xlu0 %711
    %v713 = vlaneseq
    %v714 = vshrl.u32 %v713, 7
    %v715 = vadd.s32 %v714, 88
    %716 = vset.pattern.permute.xlu0 %v715
    %717 = vperm.xlu0 %716, %v646
    %v718 = vpop.permute.xlu0 %717
    %v719 = vlaneseq
    %v720 = vshrl.u32 %v719, 7
    %v721 = vadd.s32 %v720, 96
    %722 = vset.pattern.permute.xlu0 %v721
    %723 = vperm.xlu0 %722, %v646
    %v724 = vpop.permute.xlu0 %723
    %v725 = vlaneseq
    %v726 = vshrl.u32 %v725, 7
    %v727 = vadd.s32 %v726, 104
    %728 = vset.pattern.permute.xlu0 %v727
    %729 = vperm.xlu0 %728, %v646
    %v730 = vpop.permute.xlu0 %729
    %v731 = vlaneseq
    %v732 = vshrl.u32 %v731, 7
    %v733 = vadd.s32 %v732, 112
    %734 = vset.pattern.permute.xlu0 %v733
    %735 = vperm.xlu0 %734, %v646
    %v736 = vpop.permute.xlu0 %735
    %v737 = vlaneseq
    %v738 = vshrl.u32 %v737, 7
    %v739 = vadd.s32 %v738, 120
    %740 = vset.pattern.permute.xlu0 %v739
    %741 = vperm.xlu0 %740, %v646
    %v742 = vpop.permute.xlu0 %741
    %v743 = vmul.f32 %v555, %v32
    %v744 = vmul.f32 %v561, %v33
    %v745 = vmul.f32 %v567, %v34
    %v746 = vmul.f32 %v573, %v35
    %v747 = vmul.f32 %v579, %v36
    %v748 = vmul.f32 %v585, %v37
    %v749 = vmul.f32 %v591, %v38
    %v750 = vmul.f32 %v597, %v39
    %v751 = vmul.f32 %v603, %v40
    %v752 = vmul.f32 %v609, %v41
    %v753 = vmul.f32 %v615, %v42
    %v754 = vmul.f32 %v621, %v43
    %v755 = vmul.f32 %v627, %v44
    %v756 = vmul.f32 %v633, %v45
    %v757 = vmul.f32 %v639, %v46
    %v758 = vmul.f32 %v645, %v47
    %v759 = vmul.f32 %v652, %v48
    %v760 = vmul.f32 %v658, %v49
    %v761 = vmul.f32 %v664, %v50
    %v762 = vmul.f32 %v670, %v51
    %v763 = vmul.f32 %v676, %v52
    %v764 = vmul.f32 %v682, %v53
    %v765 = vmul.f32 %v688, %v54
    %v766 = vmul.f32 %v694, %v55
    %v767 = vmul.f32 %v700, %v56
    %v768 = vmul.f32 %v706, %v57
    %v769 = vmul.f32 %v712, %v58
    %v770 = vmul.f32 %v718, %v59
    %v771 = vmul.f32 %v724, %v60
    %v772 = vmul.f32 %v730, %v61
    %v773 = vmul.f32 %v736, %v62
    %v774 = vmul.f32 %v742, %v63
    %v775 = vsel %vm69, %v743, 0.0
    %v776 = vsel %vm69, %v744, 0.0
    %v777 = vadd.f32 %v775, %v776
    %v778 = vsel %vm69, %v745, 0.0
    %v779 = vadd.f32 %v777, %v778
    %v780 = vsel %vm69, %v746, 0.0
    %v781 = vadd.f32 %v779, %v780
    %v782 = vsel %vm69, %v747, 0.0
    %v783 = vadd.f32 %v781, %v782
    %v784 = vsel %vm69, %v748, 0.0
    %v785 = vadd.f32 %v783, %v784
    %v786 = vsel %vm69, %v749, 0.0
    %v787 = vadd.f32 %v785, %v786
    %v788 = vsel %vm69, %v750, 0.0
    %v789 = vadd.f32 %v787, %v788
    %v790 = vsel %vm69, %v751, 0.0
    %v791 = vadd.f32 %v789, %v790
    %v792 = vsel %vm69, %v752, 0.0
    %v793 = vadd.f32 %v791, %v792
    %v794 = vsel %vm69, %v753, 0.0
    %v795 = vadd.f32 %v793, %v794
    %v796 = vsel %vm69, %v754, 0.0
    %v797 = vadd.f32 %v795, %v796
    %v798 = vsel %vm69, %v755, 0.0
    %v799 = vadd.f32 %v797, %v798
    %v800 = vsel %vm69, %v756, 0.0
    %v801 = vadd.f32 %v799, %v800
    %v802 = vsel %vm69, %v757, 0.0
    %v803 = vadd.f32 %v801, %v802
    %v804 = vsel %vm69, %v758, 0.0
    %v805 = vadd.f32 %v803, %v804
    %v806 = vrot.slane %v805, 4
    %v807 = vadd.f32 %v805, %v806
    %v808 = vrot.slane %v807, 2
    %v809 = vadd.f32 %v807, %v808
    %v810 = vrot.slane %v809, 1
    %v811 = vadd.f32 %v809, %v810
    %v812 = vsel %vm69, %v759, 0.0
    %v813 = vsel %vm69, %v760, 0.0
    %v814 = vadd.f32 %v812, %v813
    %v815 = vsel %vm69, %v761, 0.0
    %v816 = vadd.f32 %v814, %v815
    %v817 = vsel %vm69, %v762, 0.0
    %v818 = vadd.f32 %v816, %v817
    %v819 = vsel %vm69, %v763, 0.0
    %v820 = vadd.f32 %v818, %v819
    %v821 = vsel %vm69, %v764, 0.0
    %v822 = vadd.f32 %v820, %v821
    %v823 = vsel %vm69, %v765, 0.0
    %v824 = vadd.f32 %v822, %v823
    %v825 = vsel %vm69, %v766, 0.0
    %v826 = vadd.f32 %v824, %v825
    %v827 = vsel %vm69, %v767, 0.0
    %v828 = vadd.f32 %v826, %v827
    %v829 = vsel %vm69, %v768, 0.0
    %v830 = vadd.f32 %v828, %v829
    %v831 = vsel %vm69, %v769, 0.0
    %v832 = vadd.f32 %v830, %v831
    %v833 = vsel %vm69, %v770, 0.0
    %v834 = vadd.f32 %v832, %v833
    %v835 = vsel %vm69, %v771, 0.0
    %v836 = vadd.f32 %v834, %v835
    %v837 = vsel %vm69, %v772, 0.0
    %v838 = vadd.f32 %v836, %v837
    %v839 = vsel %vm69, %v773, 0.0
    %v840 = vadd.f32 %v838, %v839
    %v841 = vsel %vm69, %v774, 0.0
    %v842 = vadd.f32 %v840, %v841
    %v843 = vrot.slane %v842, 4
    %v844 = vadd.f32 %v842, %v843
    %v845 = vrot.slane %v844, 2
    %v846 = vadd.f32 %v844, %v845
    %v847 = vrot.slane %v846, 1
    %v848 = vadd.f32 %v846, %v847
    %v849 = vld [vmem:[%s5] sm:$0xff]
    %v850 = vld [vmem:[%s5 + $0x8] sm:$0xff]
    %v851 = vld [vmem:[%s5 + $0x10] sm:$0xff]
    %v852 = vld [vmem:[%s5 + $0x18] sm:$0xff]
    %v853 = vld [vmem:[%s6] sm:$0xff]
    %v854 = vld [vmem:[%s6 + $0x8] sm:$0xff]
    %v855 = vld [vmem:[%s6 + $0x10] sm:$0xff]
    %v856 = vld [vmem:[%s6 + $0x18] sm:$0xff]
    %v859 = vsel %vm519, %v848, %v811
    %v860 = vsel %vm69, %v859, 0
    %862 = vmatpush.msra.mxu0 0.0
    %863 = vmatpush.msra.mxu0 0.0
    %864 = vmatpush.msra.mxu0 0.0
    %865 = vmatpush.msra.mxu0 0.0
    %866 = vmatpush.msra.mxu0 0.0
    %867 = vmatpush.msra.mxu0 0.0
    %868 = vmatpush.msra.mxu0 0.0
    %869 = vmatpush.msra.mxu0 0.0
    %870 = vmatpush.msra.mxu0 0.0
    %871 = vmatpush.msra.mxu0 0.0
    %872 = vmatpush.msra.mxu0 0.0
    %873 = vmatpush.msra.mxu0 0.0
    %v874 = vand.u32 %v856, 4294901760
    %875 = vmatpush.msra.mxu0 %v874
    %v876 = vand.u32 %v855, 4294901760
    %877 = vmatpush.msra.mxu0 %v876
    %v878 = vand.u32 %v854, 4294901760
    %879 = vmatpush.msra.mxu0 %v878
    %v880 = vand.u32 %v853, 4294901760
    %881 = vmatpush.msra.mxu0 %v880
    %v882 = vand.u32 %v860, 4294901760
    %v883 = vsub.f32 %v860, %v882
    %v884 = vand.u32 %v883, 4294901760
    %v885 = vsub.f32 %v883, %v884
    %v886 = vand.u32 %v885, 4294901760
    %887 = vmatmul.f32.gmra.mxu0 %v886
    %v888 = vpop.f32.mrf.mxu0
    %v889 = vadd.f32 0.0, %v888
    %890 = vdwg.mxu0
    %891 = vmatpush.msra.mxu0 0.0
    %892 = vmatpush.msra.mxu0 0.0
    %893 = vmatpush.msra.mxu0 0.0
    %894 = vmatpush.msra.mxu0 0.0
    %895 = vmatpush.msra.mxu0 0.0
    %896 = vmatpush.msra.mxu0 0.0
    %897 = vmatpush.msra.mxu0 0.0
    %898 = vmatpush.msra.mxu0 0.0
    %899 = vmatpush.msra.mxu0 0.0
    %900 = vmatpush.msra.mxu0 0.0
    %901 = vmatpush.msra.mxu0 0.0
    %902 = vmatpush.msra.mxu0 0.0
    %v903 = vand.u32 %v856, 4294901760
    %v904 = vsub.f32 %v856, %v903
    %v905 = vand.u32 %v904, 4294901760
    %v906 = vsub.f32 %v904, %v905
    %v907 = vand.u32 %v906, 4294901760
    %908 = vmatpush.msra.mxu0 %v907
    %v909 = vand.u32 %v855, 4294901760
    %v910 = vsub.f32 %v855, %v909
    %v911 = vand.u32 %v910, 4294901760
    %v912 = vsub.f32 %v910, %v911
    %v913 = vand.u32 %v912, 4294901760
    %914 = vmatpush.msra.mxu0 %v913
    %v915 = vand.u32 %v854, 4294901760
    %v916 = vsub.f32 %v854, %v915
    %v917 = vand.u32 %v916, 4294901760
    %v918 = vsub.f32 %v916, %v917
    %v919 = vand.u32 %v918, 4294901760
    %920 = vmatpush.msra.mxu0 %v919
    %v921 = vand.u32 %v853, 4294901760
    %v922 = vsub.f32 %v853, %v921
    %v923 = vand.u32 %v922, 4294901760
    %v924 = vsub.f32 %v922, %v923
    %v925 = vand.u32 %v924, 4294901760
    %926 = vmatpush.msra.mxu0 %v925
    %v927 = vand.u32 %v860, 4294901760
    %928 = vmatmul.f32.gmra.mxu0 %v927
    %v929 = vpop.f32.mrf.mxu0
    %v930 = vadd.f32 %v889, %v929
    %931 = vdwg.mxu0
    %932 = vmatpush.msra.mxu0 0.0
    %933 = vmatpush.msra.mxu0 0.0
    %934 = vmatpush.msra.mxu0 0.0
    %935 = vmatpush.msra.mxu0 0.0
    %936 = vmatpush.msra.mxu0 0.0
    %937 = vmatpush.msra.mxu0 0.0
    %938 = vmatpush.msra.mxu0 0.0
    %939 = vmatpush.msra.mxu0 0.0
    %940 = vmatpush.msra.mxu0 0.0
    %941 = vmatpush.msra.mxu0 0.0
    %942 = vmatpush.msra.mxu0 0.0
    %943 = vmatpush.msra.mxu0 0.0
    %v944 = vand.u32 %v856, 4294901760
    %v945 = vsub.f32 %v856, %v944
    %946 = vmatpush.msra.mxu0 %v945
    %v947 = vand.u32 %v855, 4294901760
    %v948 = vsub.f32 %v855, %v947
    %949 = vmatpush.msra.mxu0 %v948
    %v950 = vand.u32 %v854, 4294901760
    %v951 = vsub.f32 %v854, %v950
    %952 = vmatpush.msra.mxu0 %v951
    %v953 = vand.u32 %v853, 4294901760
    %v954 = vsub.f32 %v853, %v953
    %955 = vmatpush.msra.mxu0 %v954
    %v956 = vand.u32 %v860, 4294901760
    %v957 = vsub.f32 %v860, %v956
    %958 = vmatmul.f32.gmra.mxu0 %v957
    %v959 = vpop.f32.mrf.mxu0
    %v960 = vadd.f32 %v930, %v959
    %961 = vdwg.mxu0
    %962 = vmatpush.msra.mxu0 0.0
    %963 = vmatpush.msra.mxu0 0.0
    %964 = vmatpush.msra.mxu0 0.0
    %965 = vmatpush.msra.mxu0 0.0
    %966 = vmatpush.msra.mxu0 0.0
    %967 = vmatpush.msra.mxu0 0.0
    %968 = vmatpush.msra.mxu0 0.0
    %969 = vmatpush.msra.mxu0 0.0
    %970 = vmatpush.msra.mxu0 0.0
    %971 = vmatpush.msra.mxu0 0.0
    %972 = vmatpush.msra.mxu0 0.0
    %973 = vmatpush.msra.mxu0 0.0
    %v974 = vand.u32 %v856, 4294901760
    %975 = vmatpush.msra.mxu0 %v974
    %v976 = vand.u32 %v855, 4294901760
    %977 = vmatpush.msra.mxu0 %v976
    %v978 = vand.u32 %v854, 4294901760
    %979 = vmatpush.msra.mxu0 %v978
    %v980 = vand.u32 %v853, 4294901760
    %981 = vmatpush.msra.mxu0 %v980
    %v982 = vand.u32 %v860, 4294901760
    %v983 = vsub.f32 %v860, %v982
    %v984 = vand.u32 %v983, 4294901760
    %985 = vmatmul.f32.gmra.mxu0 %v984
    %v986 = vpop.f32.mrf.mxu0
    %v987 = vadd.f32 %v960, %v986
    %988 = vdwg.mxu0
    %989 = vmatpush.msra.mxu0 0.0
    %990 = vmatpush.msra.mxu0 0.0
    %991 = vmatpush.msra.mxu0 0.0
    %992 = vmatpush.msra.mxu0 0.0
    %993 = vmatpush.msra.mxu0 0.0
    %994 = vmatpush.msra.mxu0 0.0
    %995 = vmatpush.msra.mxu0 0.0
    %996 = vmatpush.msra.mxu0 0.0
    %997 = vmatpush.msra.mxu0 0.0
    %998 = vmatpush.msra.mxu0 0.0
    %999 = vmatpush.msra.mxu0 0.0
    %1000 = vmatpush.msra.mxu0 0.0
    %v1001 = vand.u32 %v856, 4294901760
    %v1002 = vsub.f32 %v856, %v1001
    %v1003 = vand.u32 %v1002, 4294901760
    %1004 = vmatpush.msra.mxu0 %v1003
    %v1005 = vand.u32 %v855, 4294901760
    %v1006 = vsub.f32 %v855, %v1005
    %v1007 = vand.u32 %v1006, 4294901760
    %1008 = vmatpush.msra.mxu0 %v1007
    %v1009 = vand.u32 %v854, 4294901760
    %v1010 = vsub.f32 %v854, %v1009
    %v1011 = vand.u32 %v1010, 4294901760
    %1012 = vmatpush.msra.mxu0 %v1011
    %v1013 = vand.u32 %v853, 4294901760
    %v1014 = vsub.f32 %v853, %v1013
    %v1015 = vand.u32 %v1014, 4294901760
    %1016 = vmatpush.msra.mxu0 %v1015
    %v1017 = vand.u32 %v860, 4294901760
    %1018 = vmatmul.f32.gmra.mxu0 %v1017
    %v1019 = vpop.f32.mrf.mxu0
    %v1020 = vadd.f32 %v987, %v1019
    %1021 = vdwg.mxu0
    %1022 = vmatpush.msra.mxu0 0.0
    %1023 = vmatpush.msra.mxu0 0.0
    %1024 = vmatpush.msra.mxu0 0.0
    %1025 = vmatpush.msra.mxu0 0.0
    %1026 = vmatpush.msra.mxu0 0.0
    %1027 = vmatpush.msra.mxu0 0.0
    %1028 = vmatpush.msra.mxu0 0.0
    %1029 = vmatpush.msra.mxu0 0.0
    %1030 = vmatpush.msra.mxu0 0.0
    %1031 = vmatpush.msra.mxu0 0.0
    %1032 = vmatpush.msra.mxu0 0.0
    %1033 = vmatpush.msra.mxu0 0.0
    %v1034 = vand.u32 %v856, 4294901760
    %1035 = vmatpush.msra.mxu0 %v1034
    %v1036 = vand.u32 %v855, 4294901760
    %1037 = vmatpush.msra.mxu0 %v1036
    %v1038 = vand.u32 %v854, 4294901760
    %1039 = vmatpush.msra.mxu0 %v1038
    %v1040 = vand.u32 %v853, 4294901760
    %1041 = vmatpush.msra.mxu0 %v1040
    %v1042 = vand.u32 %v860, 4294901760
    %1043 = vmatmul.f32.gmra.mxu0 %v1042
    %v1044 = vpop.f32.mrf.mxu0
    %v1045 = vadd.f32 %v1020, %v1044
    %1046 = vdwg.mxu0
    %v1048 = vsel %vm69, %v30, 0
    %1050 = vmatpush.msra.mxu0 0.0
    %1051 = vmatpush.msra.mxu0 0.0
    %1052 = vmatpush.msra.mxu0 0.0
    %1053 = vmatpush.msra.mxu0 0.0
    %1054 = vmatpush.msra.mxu0 0.0
    %1055 = vmatpush.msra.mxu0 0.0
    %1056 = vmatpush.msra.mxu0 0.0
    %1057 = vmatpush.msra.mxu0 0.0
    %1058 = vmatpush.msra.mxu0 0.0
    %1059 = vmatpush.msra.mxu0 0.0
    %1060 = vmatpush.msra.mxu0 0.0
    %1061 = vmatpush.msra.mxu0 0.0
    %v1062 = vand.u32 %v852, 4294901760
    %1063 = vmatpush.msra.mxu0 %v1062
    %v1064 = vand.u32 %v851, 4294901760
    %1065 = vmatpush.msra.mxu0 %v1064
    %v1066 = vand.u32 %v850, 4294901760
    %1067 = vmatpush.msra.mxu0 %v1066
    %v1068 = vand.u32 %v849, 4294901760
    %1069 = vmatpush.msra.mxu0 %v1068
    %v1070 = vand.u32 %v1048, 4294901760
    %v1071 = vsub.f32 %v1048, %v1070
    %v1072 = vand.u32 %v1071, 4294901760
    %v1073 = vsub.f32 %v1071, %v1072
    %v1074 = vand.u32 %v1073, 4294901760
    %1075 = vmatmul.f32.gmra.mxu0 %v1074
    %v1076 = vpop.f32.mrf.mxu0
    %v1077 = vadd.f32 %v1045, %v1076
    %1078 = vdwg.mxu0
    %1079 = vmatpush.msra.mxu0 0.0
    %1080 = vmatpush.msra.mxu0 0.0
    %1081 = vmatpush.msra.mxu0 0.0
    %1082 = vmatpush.msra.mxu0 0.0
    %1083 = vmatpush.msra.mxu0 0.0
    %1084 = vmatpush.msra.mxu0 0.0
    %1085 = vmatpush.msra.mxu0 0.0
    %1086 = vmatpush.msra.mxu0 0.0
    %1087 = vmatpush.msra.mxu0 0.0
    %1088 = vmatpush.msra.mxu0 0.0
    %1089 = vmatpush.msra.mxu0 0.0
    %1090 = vmatpush.msra.mxu0 0.0
    %v1091 = vand.u32 %v852, 4294901760
    %v1092 = vsub.f32 %v852, %v1091
    %v1093 = vand.u32 %v1092, 4294901760
    %v1094 = vsub.f32 %v1092, %v1093
    %v1095 = vand.u32 %v1094, 4294901760
    %1096 = vmatpush.msra.mxu0 %v1095
    %v1097 = vand.u32 %v851, 4294901760
    %v1098 = vsub.f32 %v851, %v1097
    %v1099 = vand.u32 %v1098, 4294901760
    %v1100 = vsub.f32 %v1098, %v1099
    %v1101 = vand.u32 %v1100, 4294901760
    %1102 = vmatpush.msra.mxu0 %v1101
    %v1103 = vand.u32 %v850, 4294901760
    %v1104 = vsub.f32 %v850, %v1103
    %v1105 = vand.u32 %v1104, 4294901760
    %v1106 = vsub.f32 %v1104, %v1105
    %v1107 = vand.u32 %v1106, 4294901760
    %1108 = vmatpush.msra.mxu0 %v1107
    %v1109 = vand.u32 %v849, 4294901760
    %v1110 = vsub.f32 %v849, %v1109
    %v1111 = vand.u32 %v1110, 4294901760
    %v1112 = vsub.f32 %v1110, %v1111
    %v1113 = vand.u32 %v1112, 4294901760
    %1114 = vmatpush.msra.mxu0 %v1113
    %v1115 = vand.u32 %v1048, 4294901760
    %1116 = vmatmul.f32.gmra.mxu0 %v1115
    %v1117 = vpop.f32.mrf.mxu0
    %v1118 = vadd.f32 %v1077, %v1117
    %1119 = vdwg.mxu0
    %1120 = vmatpush.msra.mxu0 0.0
    %1121 = vmatpush.msra.mxu0 0.0
    %1122 = vmatpush.msra.mxu0 0.0
    %1123 = vmatpush.msra.mxu0 0.0
    %1124 = vmatpush.msra.mxu0 0.0
    %1125 = vmatpush.msra.mxu0 0.0
    %1126 = vmatpush.msra.mxu0 0.0
    %1127 = vmatpush.msra.mxu0 0.0
    %1128 = vmatpush.msra.mxu0 0.0
    %1129 = vmatpush.msra.mxu0 0.0
    %1130 = vmatpush.msra.mxu0 0.0
    %1131 = vmatpush.msra.mxu0 0.0
    %v1132 = vand.u32 %v852, 4294901760
    %v1133 = vsub.f32 %v852, %v1132
    %1134 = vmatpush.msra.mxu0 %v1133
    %v1135 = vand.u32 %v851, 4294901760
    %v1136 = vsub.f32 %v851, %v1135
    %1137 = vmatpush.msra.mxu0 %v1136
    %v1138 = vand.u32 %v850, 4294901760
    %v1139 = vsub.f32 %v850, %v1138
    %1140 = vmatpush.msra.mxu0 %v1139
    %v1141 = vand.u32 %v849, 4294901760
    %v1142 = vsub.f32 %v849, %v1141
    %1143 = vmatpush.msra.mxu0 %v1142
    %v1144 = vand.u32 %v1048, 4294901760
    %v1145 = vsub.f32 %v1048, %v1144
    %1146 = vmatmul.f32.gmra.mxu0 %v1145
    %v1147 = vpop.f32.mrf.mxu0
    %v1148 = vadd.f32 %v1118, %v1147
    %1149 = vdwg.mxu0
    %1150 = vmatpush.msra.mxu0 0.0
    %1151 = vmatpush.msra.mxu0 0.0
    %1152 = vmatpush.msra.mxu0 0.0
    %1153 = vmatpush.msra.mxu0 0.0
    %1154 = vmatpush.msra.mxu0 0.0
    %1155 = vmatpush.msra.mxu0 0.0
    %1156 = vmatpush.msra.mxu0 0.0
    %1157 = vmatpush.msra.mxu0 0.0
    %1158 = vmatpush.msra.mxu0 0.0
    %1159 = vmatpush.msra.mxu0 0.0
    %1160 = vmatpush.msra.mxu0 0.0
    %1161 = vmatpush.msra.mxu0 0.0
    %v1162 = vand.u32 %v852, 4294901760
    %1163 = vmatpush.msra.mxu0 %v1162
    %v1164 = vand.u32 %v851, 4294901760
    %1165 = vmatpush.msra.mxu0 %v1164
    %v1166 = vand.u32 %v850, 4294901760
    %1167 = vmatpush.msra.mxu0 %v1166
    %v1168 = vand.u32 %v849, 4294901760
    %1169 = vmatpush.msra.mxu0 %v1168
    %v1170 = vand.u32 %v1048, 4294901760
    %v1171 = vsub.f32 %v1048, %v1170
    %v1172 = vand.u32 %v1171, 4294901760
    %1173 = vmatmul.f32.gmra.mxu0 %v1172
    %v1174 = vpop.f32.mrf.mxu0
    %v1175 = vadd.f32 %v1148, %v1174
    %1176 = vdwg.mxu0
    %1177 = vmatpush.msra.mxu0 0.0
    %1178 = vmatpush.msra.mxu0 0.0
    %1179 = vmatpush.msra.mxu0 0.0
    %1180 = vmatpush.msra.mxu0 0.0
    %1181 = vmatpush.msra.mxu0 0.0
    %1182 = vmatpush.msra.mxu0 0.0
    %1183 = vmatpush.msra.mxu0 0.0
    %1184 = vmatpush.msra.mxu0 0.0
    %1185 = vmatpush.msra.mxu0 0.0
    %1186 = vmatpush.msra.mxu0 0.0
    %1187 = vmatpush.msra.mxu0 0.0
    %1188 = vmatpush.msra.mxu0 0.0
    %v1189 = vand.u32 %v852, 4294901760
    %v1190 = vsub.f32 %v852, %v1189
    %v1191 = vand.u32 %v1190, 4294901760
    %1192 = vmatpush.msra.mxu0 %v1191
    %v1193 = vand.u32 %v851, 4294901760
    %v1194 = vsub.f32 %v851, %v1193
    %v1195 = vand.u32 %v1194, 4294901760
    %1196 = vmatpush.msra.mxu0 %v1195
    %v1197 = vand.u32 %v850, 4294901760
    %v1198 = vsub.f32 %v850, %v1197
    %v1199 = vand.u32 %v1198, 4294901760
    %1200 = vmatpush.msra.mxu0 %v1199
    %v1201 = vand.u32 %v849, 4294901760
    %v1202 = vsub.f32 %v849, %v1201
    %v1203 = vand.u32 %v1202, 4294901760
    %1204 = vmatpush.msra.mxu0 %v1203
    %v1205 = vand.u32 %v1048, 4294901760
    %1206 = vmatmul.f32.gmra.mxu0 %v1205
    %v1207 = vpop.f32.mrf.mxu0
    %v1208 = vadd.f32 %v1175, %v1207
    %1209 = vdwg.mxu0
    %1210 = vmatpush.msra.mxu0 0.0
    %1211 = vmatpush.msra.mxu0 0.0
    %1212 = vmatpush.msra.mxu0 0.0
    %1213 = vmatpush.msra.mxu0 0.0
    %1214 = vmatpush.msra.mxu0 0.0
    %1215 = vmatpush.msra.mxu0 0.0
    %1216 = vmatpush.msra.mxu0 0.0
    %1217 = vmatpush.msra.mxu0 0.0
    %1218 = vmatpush.msra.mxu0 0.0
    %1219 = vmatpush.msra.mxu0 0.0
    %1220 = vmatpush.msra.mxu0 0.0
    %1221 = vmatpush.msra.mxu0 0.0
    %v1222 = vand.u32 %v852, 4294901760
    %1223 = vmatpush.msra.mxu0 %v1222
    %v1224 = vand.u32 %v851, 4294901760
    %1225 = vmatpush.msra.mxu0 %v1224
    %v1226 = vand.u32 %v850, 4294901760
    %1227 = vmatpush.msra.mxu0 %v1226
    %v1228 = vand.u32 %v849, 4294901760
    %1229 = vmatpush.msra.mxu0 %v1228
    %v1230 = vand.u32 %v1048, 4294901760
    %1231 = vmatmul.f32.gmra.mxu0 %v1230
    %v1232 = vpop.f32.mrf.mxu0
    %v1233 = vadd.f32 %v1208, %v1232
    %1234 = vdwg.mxu0
    %v1235 = vtanh.pop %v1233
    %vm1236 = vcmask 254976
    %1237 = vst.msk [vmem:[#allocation2] sm:$0x3] %vm1236, %v1235
    // Predicated region
    $region30: #{tpu_custom_call.1} parent=1 // pred_check
      _
    $region31: #{tpu_custom_call.1} parent=1 // pred_check_branch
      %1239 = sbr.rel (0) target = $region33
    $region32: #{tpu_custom_call.1} parent=1 // pred_region
      %1241 = vsyncadd [#allocation3], 0
      %s1243 = sshll.u32 [#allocation2], 4
      %s1244 = int_to_ptr.vmem [resolvable:$true] %s1243
      %s1245 = sshll.u32 %s7, 4
      %s1246 = int_to_ptr.hbm [resolvable:$true] %s1245
      %1248 = dma.vmem_to_hbm [thread:$0]  %s1244, 32, %s1246, [#allocation3]
    $region33: #{tpu_custom_call.1} parent=1 // pred_fallthru
      _
    // Predicated region
    $region34: #{tpu_custom_call.1} parent=1 // pred_check
      _
    $region35: #{tpu_custom_call.1} parent=1 // pred_check_branch
      %1250 = sbr.rel (0) target = $region37
    $region36: #{tpu_custom_call.1} parent=1 // pred_region
      %1252 = vsyncadd [#allocation5], 0
      %s1254 = sshll.u32 [#allocation4], 4
      %s1255 = int_to_ptr.vmem [resolvable:$true] %s1254
      %s1256 = sshll.u32 %s8, 4
      %s1257 = int_to_ptr.hbm [resolvable:$true] %s1256
      %1259 = dma.vmem_to_hbm [thread:$0]  %s1255, 32, %s1257, [#allocation5]
    $region37: #{tpu_custom_call.1} parent=1 // pred_fallthru
      _
    // Predicated region
    $region38: #{tpu_custom_call.1} parent=1 // pred_check
      _
    $region39: #{tpu_custom_call.1} parent=1 // pred_check_branch
      %1261 = sbr.rel (0) target = $region41
    $region40: #{tpu_custom_call.1} parent=1 // pred_region
      %1263 = dma.done [#allocation3], 32
    $region41: #{tpu_custom_call.1} parent=1 // pred_fallthru
      _
    // Predicated region
    $region42: #{tpu_custom_call.1} parent=1 // pred_check
      _
    $region43: #{tpu_custom_call.1} parent=1 // pred_check_branch
      %1265 = sbr.rel (0) target = $region45
    $region44: #{tpu_custom_call.1} parent=1 // pred_region
      %1267 = dma.done [#allocation5], 32
    $region45: #{tpu_custom_call.1} parent=1 // pred_fallthru
      _
    %1268 = vsyncpa [#allocation3], 1
    %1269 = vsyncpa [#allocation5], 1

</llo_original>
